<compile_context>
chip_gen: v6e
topology: v6e:2x2x1
jax: 0.10.0
libtpu: 0.0.40
codegen_flags: <defaults>
</compile_context>

<pallas_src>
import numpy as np
import jax
import jax.numpy as jnp
from jax import lax
from jax.experimental import pallas as pl
from jax.experimental.pallas import tpu as pltpu


# ---------------------------------------------------------------------------
# Static weight construction (host-side glue, plain numpy)
# ---------------------------------------------------------------------------
def _bilinear_matrix_align_corners(out_size: int, in_size: int) -> np.ndarray:
    """Row-interpolation matrix M (out_size, in_size): y = M @ x reproduces
    1-D linear interpolation with align_corners=True."""
    M = np.zeros((out_size, in_size), dtype=np.float32)
    if in_size == 1 or out_size == 1:
        M[:, 0] = 1.0
        return M
    step = (in_size - 1) / (out_size - 1)
    for i in range(out_size):
        src = i * step
        lo = int(np.floor(src))
        lo = min(lo, in_size - 1)
        hi = min(lo + 1, in_size - 1)
        frac = src - lo
        M[i, lo] += 1.0 - frac
        M[i, hi] += frac
    return M


def _zoom_matrices(h: int, w: int, scale: float):
    """Build A (h,h) and B (w,w) such that out = A @ x @ B.T reproduces Zoom.
    Uses int(np.round(...)) exactly like the PyTorch module (round-half-even)."""
    assert (-1 < scale < 0) or (0 < scale < 1)
    if scale > 0:
        zh = int(np.round(h * scale))
        zw = int(np.round(w * scale))
        hc, wc = h - 2 * zh, w - 2 * zw
        Ay = _bilinear_matrix_align_corners(h, hc)   # acts on cropped rows
        Bx = _bilinear_matrix_align_corners(w, wc)   # acts on cropped cols
        A = np.zeros((h, h), dtype=np.float32)
        B = np.zeros((w, w), dtype=np.float32)
        A[:, zh:zh + hc] = Ay                        # crop folded into weights
        B[:, zw:zw + wc] = Bx
    else:
        ph = -int(np.round(h * scale))
        pw = -int(np.round(w * scale))
        Ay = _bilinear_matrix_align_corners(h, h + 2 * ph)  # acts on padded rows
        Bx = _bilinear_matrix_align_corners(w, w + 2 * pw)
        # zero padding contributes nothing -> keep only the original columns
        A = Ay[:, ph:ph + h].copy()
        B = Bx[:, pw:pw + w].copy()
    return A, B


# ---------------------------------------------------------------------------
# Generation-aware configuration / block sizing
# ---------------------------------------------------------------------------
_KRON_MAX_ELEMS = 1024   # use the fused kron(A,B) path when H*W <= this


def _tpu_config():
    """VMEM limit, per-step block budget (f32-equivalent) and whether to prefer
    >= 2 grid steps (for splitting the parallel axis across 2 TensorCores)."""
    kind = ""
    try:
        kind = jax.devices()[0].device_kind.lower()
    except Exception:
        pass
    if "v7" in kind:
        # v7x: 64 MiB VMEM per TC, 2 TCs -> smaller blocks, leave scratch headroom.
        return dict(vmem_limit=40 * 1024 * 1024,
                    block_budget=4 * 1024 * 1024,
                    split_two=True)
    # v5e / v6e: single TensorCore, 128 MiB physical VMEM -> big blocks, 1 step ok.
    return dict(vmem_limit=64 * 1024 * 1024,
                block_budget=8 * 1024 * 1024,
                split_two=False)


def _block_channels(nc: int, bytes_per_image_f32: int, budget_bytes: int,
                    split_two: bool, align: int) -> int:
    """Images per grid step.  When the slab does not cover all nc images, it is
    kept a multiple of `align` (sublane alignment for 2-D blocks)."""
    per = max(1, bytes_per_image_f32)
    max_bc = max(align, (budget_bytes // per // align) * align)
    bc = min(nc, max_bc)
    if split_two and bc == nc:
        half = ((pl.cdiv(nc, 2) + align - 1) // align) * align
        if half < nc:
            bc = half
    return bc


# ---------------------------------------------------------------------------
# Kernels
# ---------------------------------------------------------------------------
def _zoom_kron_kernel(kt_ref, x_ref, o_ref):
    # Single lane-dense MXU matmul: out = x_flat @ kron(A, B)^T
    o_ref[...] = jnp.dot(
        x_ref[...], kt_ref[...], preferred_element_type=jnp.float32
    ).astype(o_ref.dtype)


def _zoom_kernel(a_ref, bt_ref, x_ref, o_ref):
    bc = x_ref.shape[0]
    a = a_ref[...]          # (H, H), x.dtype, resident across the grid
    bt = bt_ref[...]        # (W, W) = B^T, x.dtype, resident across the grid

    def body(i, carry):
        # y = x_i @ B^T (f32 accumulation); out_i = A @ y, written straight out.
        y = jnp.dot(x_ref[i], bt, preferred_element_type=jnp.float32)
        y = y.astype(a.dtype)   # no-op for f32 inputs; bf16 MXU for bf16 inputs
        o_ref[i] = jnp.dot(a, y, preferred_element_type=jnp.float32).astype(o_ref.dtype)
        return carry

    lax.fori_loop(0, bc, body, 0, unroll=True if bc <= 8 else 4)


# ---------------------------------------------------------------------------
# Wrapper
# ---------------------------------------------------------------------------
def zoom_forward(x: jax.Array, scale: float = 0.1,
                 interpolation: str = "bilinear") -> jax.Array:
    """x: (N, C, H, W) float array. Returns (N, C, H, W), same dtype as x."""
    assert interpolation == "bilinear", "only bilinear is implemented"
    assert (-1 < scale < 0) or (0 < scale < 1)
    n, c, h, w = x.shape
    nc = n * c
    itemsize = jnp.dtype(x.dtype).itemsize
    cfg = _tpu_config()

    A_np, B_np = _zoom_matrices(h, w, scale)

    if h * w <= _KRON_MAX_ELEMS:
        # ------- small-image fast path: one lane-dense matmul vs kron(A,B)^T
        hw = h * w
        Kt = jnp.asarray(np.ascontiguousarray(np.kron(A_np, B_np).T), dtype=x.dtype)
        bc = _block_channels(nc, hw * 4, cfg["block_budget"], cfg["split_two"], align=8)
        grid = (pl.cdiv(nc, bc),)
        cost = pl.CostEstimate(
            flops=2 * nc * hw * hw,
            transcendentals=0,
            bytes_accessed=(2 * nc * hw + hw * hw) * itemsize)
        x_flat = x.reshape(nc, hw)
        out_flat = pl.pallas_call(
            _zoom_kron_kernel,
            out_shape=jax.ShapeDtypeStruct((nc, hw), x.dtype),
            grid_spec=pltpu.PrefetchScalarGridSpec(
                num_scalar_prefetch=0,
                grid=grid,
                in_specs=[
                    # Constant block index -> DMA'd once per core, stays resident.
                    pl.BlockSpec((hw, hw), lambda i: (0, 0)),      # kron(A,B)^T
                    pl.BlockSpec((bc, hw), lambda i: (i, 0)),      # image slabs
                ],
                out_specs=pl.BlockSpec((bc, hw), lambda i: (i, 0)),
            ),
            compiler_params=pltpu.CompilerParams(
                dimension_semantics=("parallel",),
                vmem_limit_bytes=cfg["vmem_limit"],
            ),
            cost_estimate=cost,
        )(Kt, x_flat)
        return out_flat.reshape(n, c, h, w)

    # ------- general path: out[i] = A @ x[i] @ B^T, per-image fused matmuls
    A = jnp.asarray(A_np, dtype=x.dtype)
    Bt = jnp.asarray(np.ascontiguousarray(B_np.T), dtype=x.dtype)
    bc = _block_channels(nc, h * w * 4, cfg["block_budget"], cfg["split_two"], align=1)
    grid = (pl.cdiv(nc, bc),)
    cost = pl.CostEstimate(
        flops=2 * nc * h * w * (h + w),
        transcendentals=0,
        bytes_accessed=(2 * nc * h * w + h * h + w * w) * itemsize)
    x_flat = x.reshape(nc, h, w)
    out_flat = pl.pallas_call(
        _zoom_kernel,
        out_shape=jax.ShapeDtypeStruct((nc, h, w), x.dtype),
        grid_spec=pltpu.PrefetchScalarGridSpec(
            num_scalar_prefetch=0,
            grid=grid,
            in_specs=[
                pl.BlockSpec((h, h), lambda i: (0, 0)),          # A
                pl.BlockSpec((w, w), lambda i: (0, 0)),          # B^T
                pl.BlockSpec((bc, h, w), lambda i: (i, 0, 0)),   # image slabs
            ],
            out_specs=pl.BlockSpec((bc, h, w), lambda i: (i, 0, 0)),
        ),
        compiler_params=pltpu.CompilerParams(
            dimension_semantics=("parallel",),
            vmem_limit_bytes=cfg["vmem_limit"],
        ),
        cost_estimate=cost,
    )(A, Bt, x_flat)
    return out_flat.reshape(n, c, h, w)


# ---------------------------------------------------------------------------
# Pure-numpy reference (same linear-map semantics) for a sanity check
# ---------------------------------------------------------------------------
def _zoom_reference(x_np: np.ndarray, scale: float) -> np.ndarray:
    h, w = x_np.shape[-2:]
    A, B = _zoom_matrices(h, w, scale)
    return np.einsum("ph,nchw,qw->ncpq", A, x_np.astype(np.float32), B)


if __name__ == "__main__":
    key = jax.random.PRNGKey(0)
    N, C, H, W = 2, 4, 16, 16
    x = jax.random.normal(key, (N, C, H, W), dtype=jnp.float32)

    # Small-image (kron) path: zoom-in and zoom-out.
    for s in (0.1, -0.1):
        out = jax.block_until_ready(zoom_forward(x, scale=s, interpolation="bilinear"))
        ref = _zoom_reference(np.asarray(x), s)
        np.testing.assert_allclose(np.asarray(out), ref, rtol=1e-4, atol=1e-4)

    # General (per-image two-matmul) path: H*W above the kron threshold.
    x2 = jax.random.normal(jax.random.PRNGKey(1), (2, 4, 40, 40), dtype=jnp.float32)
    out2 = jax.block_until_ready(zoom_forward(x2, scale=0.1))
    ref2 = _zoom_reference(np.asarray(x2), 0.1)
    np.testing.assert_allclose(np.asarray(out2), ref2, rtol=1e-4, atol=1e-4)

    print("KERNEL_OK")
</pallas_src>

<mosaic_0001>
module attributes {stable_mosaic.version = 11 : i64} {
  func.func @_zoom_kron_kernel(%arg0: i32, %arg1: memref<256x256xf32, #tpu.memory_space<vmem>>, %arg2: memref<8x256xf32, #tpu.memory_space<vmem>>, %arg3: memref<8x256xf32, #tpu.memory_space<vmem>>) attributes {dimension_semantics = [#tpu.dimension_semantics<parallel>], iteration_bounds = array<i64: 1>, scalar_prefetch = 0 : i64, scratch_operands = 0 : i64, tpu.core_type = #tpu.core_type<tc>, window_params = [{pipeline_mode = #tpu.pipeline_mode<synchronous>, transform_indices = @transform_0, window_bounds = array<i64: 256, 256>}, {transform_indices = @transform_1, window_bounds = array<i64: 8, 256>}, {transform_indices = @transform_2, window_bounds = array<i64: 8, 256>}]} {
    %c0 = arith.constant 0 : index
    %c0_0 = arith.constant 0 : index
    %0 = vector.load %arg2[%c0, %c0_0] : memref<8x256xf32, #tpu.memory_space<vmem>>, vector<8x256xf32>
    %c0_1 = arith.constant 0 : index
    %c0_2 = arith.constant 0 : index
    %1 = vector.load %arg1[%c0_1, %c0_2] : memref<256x256xf32, #tpu.memory_space<vmem>>, vector<256x256xf32>
    %cst = arith.constant dense<0.000000e+00> : vector<8x256xf32>
    %2 = tpu.matmul %0, %1, %cst {dimension_numbers = #tpu.dot_dimension_numbers<[1], [0], [0], [1], [0, 0, 1, 1], [], []>} : vector<8x256xf32>, vector<256x256xf32>, vector<8x256xf32> -> vector<8x256xf32>
    %c0_3 = arith.constant 0 : index
    %c0_4 = arith.constant 0 : index
    %3 = vector.load %arg3[%c0_3, %c0_4] : memref<8x256xf32, #tpu.memory_space<vmem>>, vector<8x256xf32>
    tpu.vector_store %arg3[%c0_3, %c0_4], %2 {strides = array<i32>} : memref<8x256xf32, #tpu.memory_space<vmem>>, vector<8x256xf32>,
    return
  }
  func.func @transform_0(%arg0: i32) -> (i32, i32) {
    %c0_i32 = arith.constant 0 : i32
    %c0_i32_0 = arith.constant 0 : i32
    %c0_i32_1 = arith.constant 0 : i32
    return %c0_i32, %c0_i32_0 : i32, i32
  }
  func.func @transform_1(%arg0: i32) -> (i32, i32) {
    %c0_i32 = arith.constant 0 : i32
    %c0_i32_0 = arith.constant 0 : i32
    return %arg0, %c0_i32 : i32, i32
  }
  func.func @transform_2(%arg0: i32) -> (i32, i32) {
    %c0_i32 = arith.constant 0 : i32
    %c0_i32_0 = arith.constant 0 : i32
    return %arg0, %c0_i32 : i32, i32
  }
}

</mosaic_0001>

<llo_original>
// kernel: tpu_custom_call.1
$region0: #{tpu_custom_call.1}
  #allocation0 [shape = 'u32[]', space=smem, size = 0x4, offset = 0x4, fixed_abs, tag = 'smem constant byte address 0x4 - core index']
  #allocation1 [shape = 'u32[144,128]{1,0:T(1,128)}', space=vmem, size = 0x12000, scoped, tag = 'internal scratch']
  %s0 = inlined_call_operand.hbm [shape: f32[256,256], index: 0, kind: input, shape index: {}]
  %s1 = inlined_call_operand.hbm [shape: f32[8,256], index: 1, kind: input, shape index: {}]
  %s2 = inlined_call_operand.hbm [shape: f32[8,256], index: 2, kind: output, shape index: {}]
  %s3 = sld [smem:[#allocation0]]
  $region26: #{tpu_custom_call.1} parent=0
    _
  %s5 = ssub.s32 1, %s3
  %s6 = scalar_select 0, %s5, %s3
  $region1: #{tpu_custom_call.1} parent=0
    #allocation2 [shape = 'u8[262144]{0}', space=vmem, size = 0x40000, scoped, tag = 'input window, operand 0, single buffered']
    #allocation3 [shape = 's32[1]{0}', space=sflag, size = 0x4, scoped, tag = 'scoped memory for tpu_custom_call.1']
    #allocation4 [shape = 's32[1]{0}', space=sflag, size = 0x4, scoped, tag = 'scoped memory for tpu_custom_call.1']
    #allocation5 [shape = 'u8[8192]{0}', space=vmem, size = 0x2000, scoped, tag = 'input window, operand 1, single buffered']
    #allocation6 [shape = 's32[1]{0}', space=sflag, size = 0x4, scoped, tag = 'scoped memory for tpu_custom_call.1']
    #allocation7 [shape = 'u8[8192]{0}', space=vmem, size = 0x2000, scoped, tag = 'output window, operand 0, single buffered']
    %7 = vsyncpa [#allocation3], 0
    %8 = vsyncpa [#allocation6], 0
    %9 = vsyncpa [#allocation4], 0
    // Predicated region
    $region2: #{tpu_custom_call.1} parent=1 // pred_check
      _
    $region3: #{tpu_custom_call.1} parent=1 // pred_check_branch
      %11 = sbr.rel (0) target = $region5
    $region4: #{tpu_custom_call.1} parent=1 // pred_region
      %s13 = ssub.s32 8192, 8192
      %14 = vsyncadd [#allocation3], %s13
      %s15 = sshll.u32 [#allocation2], 4
      %s16 = int_to_ptr.vmem [resolvable:$true] %s15
      %21 = dma.hbm_to_vmem [thread:$0]  %s0, 8192, %s16, [#allocation3], 256, 256, 16
    $region5: #{tpu_custom_call.1} parent=1 // pred_fallthru
      _
    // Predicated region
    $region6: #{tpu_custom_call.1} parent=1 // pred_check
      _
    $region7: #{tpu_custom_call.1} parent=1 // pred_check_branch
      %23 = sbr.rel (0) target = $region9
    $region8: #{tpu_custom_call.1} parent=1 // pred_region
      %s25 = ssub.s32 256, 256
      %26 = vsyncadd [#allocation6], %s25
      %s28 = sshll.u32 [#allocation5], 4
      %s29 = int_to_ptr.vmem [resolvable:$true] %s28
      %31 = dma.hbm_to_vmem [thread:$0]  %s1, 256, %s29, [#allocation6]
    $region9: #{tpu_custom_call.1} parent=1 // pred_fallthru
      _
    // Predicated region
    $region10: #{tpu_custom_call.1} parent=1 // pred_check
      _
    $region11: #{tpu_custom_call.1} parent=1 // pred_check_branch
      %33 = sbr.rel (0) target = $region13
    $region12: #{tpu_custom_call.1} parent=1 // pred_region
      %34 = dma.done [#allocation3], 8192
    $region13: #{tpu_custom_call.1} parent=1 // pred_fallthru
      _
    // Predicated region
    $region14: #{tpu_custom_call.1} parent=1 // pred_check
      _
    $region15: #{tpu_custom_call.1} parent=1 // pred_check_branch
      %36 = sbr.rel (0) target = $region17
    $region16: #{tpu_custom_call.1} parent=1 // pred_region
      %37 = dma.done [#allocation6], 256
    $region17: #{tpu_custom_call.1} parent=1 // pred_fallthru
      _
    %v38 = vld [vmem:[#allocation5] sm:$0xff]
    %v39 = vld [vmem:[#allocation5 + $0x8] sm:$0xff]
    %v40 = vld [vmem:[#allocation2] sm:$0xff]
    %v41 = vld [vmem:[#allocation2 + $0x8] sm:$0xff]
    %v42 = vld [vmem:[#allocation2 + $0x10] sm:$0xff]
    %v43 = vld [vmem:[#allocation2 + $0x18] sm:$0xff]
    %v44 = vld [vmem:[#allocation2 + $0x20] sm:$0xff]
    %v45 = vld [vmem:[#allocation2 + $0x28] sm:$0xff]
    %v46 = vld [vmem:[#allocation2 + $0x30] sm:$0xff]
    %v47 = vld [vmem:[#allocation2 + $0x38] sm:$0xff]
    %v48 = vld [vmem:[#allocation2 + $0x40] sm:$0xff]
    %v49 = vld [vmem:[#allocation2 + $0x48] sm:$0xff]
    %v50 = vld [vmem:[#allocation2 + $0x50] sm:$0xff]
    %v51 = vld [vmem:[#allocation2 + $0x58] sm:$0xff]
    %v52 = vld [vmem:[#allocation2 + $0x60] sm:$0xff]
    %v53 = vld [vmem:[#allocation2 + $0x68] sm:$0xff]
    %v54 = vld [vmem:[#allocation2 + $0x70] sm:$0xff]
    %v55 = vld [vmem:[#allocation2 + $0x78] sm:$0xff]
    %v56 = vld [vmem:[#allocation2 + $0x80] sm:$0xff]
    %v57 = vld [vmem:[#allocation2 + $0x88] sm:$0xff]
    %v58 = vld [vmem:[#allocation2 + $0x90] sm:$0xff]
    %v59 = vld [vmem:[#allocation2 + $0x98] sm:$0xff]
    %v60 = vld [vmem:[#allocation2 + $0xa0] sm:$0xff]
    %v61 = vld [vmem:[#allocation2 + $0xa8] sm:$0xff]
    %v62 = vld [vmem:[#allocation2 + $0xb0] sm:$0xff]
    %v63 = vld [vmem:[#allocation2 + $0xb8] sm:$0xff]
    %v64 = vld [vmem:[#allocation2 + $0xc0] sm:$0xff]
    %v65 = vld [vmem:[#allocation2 + $0xc8] sm:$0xff]
    %v66 = vld [vmem:[#allocation2 + $0xd0] sm:$0xff]
    %v67 = vld [vmem:[#allocation2 + $0xd8] sm:$0xff]
    %v68 = vld [vmem:[#allocation2 + $0xe0] sm:$0xff]
    %v69 = vld [vmem:[#allocation2 + $0xe8] sm:$0xff]
    %v70 = vld [vmem:[#allocation2 + $0xf0] sm:$0xff]
    %v71 = vld [vmem:[#allocation2 + $0xf8] sm:$0xff]
    %v72 = vld [vmem:[#allocation2 + $0x100] sm:$0xff]
    %v73 = vld [vmem:[#allocation2 + $0x108] sm:$0xff]
    %v74 = vld [vmem:[#allocation2 + $0x110] sm:$0xff]
    %v75 = vld [vmem:[#allocation2 + $0x118] sm:$0xff]
    %v76 = vld [vmem:[#allocation2 + $0x120] sm:$0xff]
    %v77 = vld [vmem:[#allocation2 + $0x128] sm:$0xff]
    %v78 = vld [vmem:[#allocation2 + $0x130] sm:$0xff]
    %v79 = vld [vmem:[#allocation2 + $0x138] sm:$0xff]
    %v80 = vld [vmem:[#allocation2 + $0x140] sm:$0xff]
    %v81 = vld [vmem:[#allocation2 + $0x148] sm:$0xff]
    %v82 = vld [vmem:[#allocation2 + $0x150] sm:$0xff]
    %v83 = vld [vmem:[#allocation2 + $0x158] sm:$0xff]
    %v84 = vld [vmem:[#allocation2 + $0x160] sm:$0xff]
    %v85 = vld [vmem:[#allocation2 + $0x168] sm:$0xff]
    %v86 = vld [vmem:[#allocation2 + $0x170] sm:$0xff]
    %v87 = vld [vmem:[#allocation2 + $0x178] sm:$0xff]
    %v88 = vld [vmem:[#allocation2 + $0x180] sm:$0xff]
    %v89 = vld [vmem:[#allocation2 + $0x188] sm:$0xff]
    %v90 = vld [vmem:[#allocation2 + $0x190] sm:$0xff]
    %v91 = vld [vmem:[#allocation2 + $0x198] sm:$0xff]
    %v92 = vld [vmem:[#allocation2 + $0x1a0] sm:$0xff]
    %v93 = vld [vmem:[#allocation2 + $0x1a8] sm:$0xff]
    %v94 = vld [vmem:[#allocation2 + $0x1b0] sm:$0xff]
    %v95 = vld [vmem:[#allocation2 + $0x1b8] sm:$0xff]
    %v96 = vld [vmem:[#allocation2 + $0x1c0] sm:$0xff]
    %v97 = vld [vmem:[#allocation2 + $0x1c8] sm:$0xff]
    %v98 = vld [vmem:[#allocation2 + $0x1d0] sm:$0xff]
    %v99 = vld [vmem:[#allocation2 + $0x1d8] sm:$0xff]
    %v100 = vld [vmem:[#allocation2 + $0x1e0] sm:$0xff]
    %v101 = vld [vmem:[#allocation2 + $0x1e8] sm:$0xff]
    %v102 = vld [vmem:[#allocation2 + $0x1f0] sm:$0xff]
    %v103 = vld [vmem:[#allocation2 + $0x1f8] sm:$0xff]
    %104 = vmatprep.subr.mxu0 %v71
    %105 = vmatpush1.msra.mxu0 %v70
    %106 = vmatprep.subr.mxu0 %v69
    %107 = vmatpush1.msra.mxu0 %v68
    %108 = vmatprep.subr.mxu0 %v67
    %109 = vmatpush1.msra.mxu0 %v66
    %110 = vmatprep.subr.mxu0 %v65
    %111 = vmatpush1.msra.mxu0 %v64
    %112 = vmatprep.subr.mxu0 %v63
    %113 = vmatpush1.msra.mxu0 %v62
    %114 = vmatprep.subr.mxu0 %v61
    %115 = vmatpush1.msra.mxu0 %v60
    %116 = vmatprep.subr.mxu0 %v59
    %117 = vmatpush1.msra.mxu0 %v58
    %118 = vmatprep.subr.mxu0 %v57
    %119 = vmatpush1.msra.mxu0 %v56
    %120 = vmatprep.subr.mxu0 %v55
    %121 = vmatpush1.msra.mxu0 %v54
    %122 = vmatprep.subr.mxu0 %v53
    %123 = vmatpush1.msra.mxu0 %v52
    %124 = vmatprep.subr.mxu0 %v51
    %125 = vmatpush1.msra.mxu0 %v50
    %126 = vmatprep.subr.mxu0 %v49
    %127 = vmatpush1.msra.mxu0 %v48
    %128 = vmatprep.subr.mxu0 %v47
    %129 = vmatpush1.msra.mxu0 %v46
    %130 = vmatprep.subr.mxu0 %v45
    %131 = vmatpush1.msra.mxu0 %v44
    %132 = vmatprep.subr.mxu0 %v43
    %133 = vmatpush1.msra.mxu0 %v42
    %134 = vmatprep.subr.mxu0 %v41
    %135 = vmatpush1.msra.mxu0 %v40
    %136 = vmatprep.subr.mxu0 %v103
    %137 = vmatpush2.msra.mxu0 %v102
    %138 = vmatprep.subr.mxu0 %v101
    %139 = vmatpush2.msra.mxu0 %v100
    %140 = vmatprep.subr.mxu0 %v99
    %141 = vmatpush2.msra.mxu0 %v98
    %142 = vmatprep.subr.mxu0 %v97
    %143 = vmatpush2.msra.mxu0 %v96
    %144 = vmatprep.subr.mxu0 %v95
    %145 = vmatpush2.msra.mxu0 %v94
    %146 = vmatprep.subr.mxu0 %v93
    %147 = vmatpush2.msra.mxu0 %v92
    %148 = vmatprep.subr.mxu0 %v91
    %149 = vmatpush2.msra.mxu0 %v90
    %150 = vmatprep.subr.mxu0 %v89
    %151 = vmatpush2.msra.mxu0 %v88
    %152 = vmatprep.subr.mxu0 %v87
    %153 = vmatpush2.msra.mxu0 %v86
    %154 = vmatprep.subr.mxu0 %v85
    %155 = vmatpush2.msra.mxu0 %v84
    %156 = vmatprep.subr.mxu0 %v83
    %157 = vmatpush2.msra.mxu0 %v82
    %158 = vmatprep.subr.mxu0 %v81
    %159 = vmatpush2.msra.mxu0 %v80
    %160 = vmatprep.subr.mxu0 %v79
    %161 = vmatpush2.msra.mxu0 %v78
    %162 = vmatprep.subr.mxu0 %v77
    %163 = vmatpush2.msra.mxu0 %v76
    %164 = vmatprep.subr.mxu0 %v75
    %165 = vmatpush2.msra.mxu0 %v74
    %166 = vmatprep.subr.mxu0 %v73
    %167 = vmatpush2.msra.mxu0 %v72
    %168 = vmatprep.mubr.f32.mxu0 %v39
    %169 = vmatmul.mubr.f32.gmra.mxu0 %v38
    %v170 = vpop.f32.mrf.mxu0
    %v171 = vadd.f32 0.0, %v170
    %v172 = vpop.f32.mrf.mxu0
    %v173 = vadd.f32 0.0, %v172
    %174 = vdwg.mxu0
    %175 = vst [vmem:[#allocation7] sm:$0xff] %v171
    %176 = vst [vmem:[#allocation7 + $0x8] sm:$0xff] %v173
    // Predicated region
    $region18: #{tpu_custom_call.1} parent=1 // pred_check
      _
    $region19: #{tpu_custom_call.1} parent=1 // pred_check_branch
      %178 = sbr.rel (0) target = $region21
    $region20: #{tpu_custom_call.1} parent=1 // pred_region
      %s180 = ssub.s32 256, 256
      %181 = vsyncadd [#allocation4], %s180
      %s183 = sshll.u32 [#allocation7], 4
      %s184 = int_to_ptr.vmem [resolvable:$true] %s183
      %186 = dma.vmem_to_hbm [thread:$0]  %s184, 256, %s2, [#allocation4]
    $region21: #{tpu_custom_call.1} parent=1 // pred_fallthru
      _
    // Predicated region
    $region22: #{tpu_custom_call.1} parent=1 // pred_check
      _
    $region23: #{tpu_custom_call.1} parent=1 // pred_check_branch
      %188 = sbr.rel (0) target = $region25
    $region24: #{tpu_custom_call.1} parent=1 // pred_region
      %189 = dma.done [#allocation4], 256
    $region25: #{tpu_custom_call.1} parent=1 // pred_fallthru
      _
    %190 = vsyncpa [#allocation3], 1
    %191 = vsyncpa [#allocation6], 1
    %192 = vsyncpa [#allocation4], 1

</llo_original>
